<compile_context>
chip_gen: v7x
topology: tpu7x:2x2x1
jax: 0.10.0
libtpu: 0.0.40
codegen_flags: <defaults>
</compile_context>

<pallas_src>
import jax
import jax.numpy as jnp
from jax.experimental import pallas as pl
from jax.experimental.pallas import tpu as pltpu

HIDDEN = 64   # nn.Linear(input_dim, 64)


def _cdiv(a, b):
    return -(-a // b)


def _round_up(a, m):
    return _cdiv(a, m) * m


def _meta_policy_kernel(x_ref, w1_ref, b1_ref, w2_ref, b2_ref, o_ref):
    # In-kernel f32 -> bf16 cast (VPU), hidden under the x DMA / MXU work.
    x = x_ref[...].astype(w1_ref.dtype)
    # fc1: (TB, D_in) @ (D_in, 64) on the MXU, bf16 inputs, f32 accumulate.
    h = jnp.dot(x, w1_ref[...], preferred_element_type=jnp.float32)
    h = jnp.maximum(h + b1_ref[...], 0.0)                  # bias + ReLU in f32
    # fc2: back to bf16 for the MXU, f32 accumulate.
    y = jnp.dot(h.astype(w2_ref.dtype), w2_ref[...],
                preferred_element_type=jnp.float32)
    y = y + b2_ref[...]                                    # bias in f32
    o_ref[...] = jax.nn.sigmoid(y).astype(o_ref.dtype)


def _choose_block_b(B, D_in, D_out, out_itemsize, block_b_max):
    # VMEM bytes per batch-tile row: double-buffered f32 x stream, double-
    # buffered output stream, plus internal scratch for the bf16 x copy and the
    # h (f32 + bf16) / y (f32) intermediates.
    bytes_per_row = (2 * 4 * D_in                 # x, f32, double-buffered
                     + 2 * out_itemsize * D_out   # out, double-buffered
                     + 2 * D_in                   # bf16 copy of x in-kernel
                     + HIDDEN * (4 + 2)           # h in f32 + bf16
                     + 4 * D_out)                 # y in f32
    vmem_budget = 24 << 20                        # headroom under 32 MiB scoped
    tb = min(block_b_max, max(256, vmem_budget // bytes_per_row))
    # v7x megacore: make mid/large batches see >= 2 grid steps.
    tb = min(tb, max(256, _round_up(_cdiv(B, 2), 16)))
    if B <= tb:
        return B                    # single block == full batch dim (always legal)
    return max(16, (tb // 16) * 16)               # multiple of 16 (bf16 sublanes)


def _vmem_limit_bytes(TB, D_in, D_out, out_itemsize):
    streams = 2 * TB * D_in * 4 + 2 * TB * D_out * out_itemsize
    weights = 2 * (D_in * HIDDEN * 2 + HIDDEN * 4 + HIDDEN * D_out * 2 + D_out * 4)
    scratch = TB * D_in * 2 + TB * HIDDEN * (4 + 2) + TB * D_out * 4
    est = int((streams + weights + scratch) * 1.3)
    return int(min(max(est, 16 << 20), 64 << 20))


def meta_policy_forward(x, w1, b1, w2, b2, *, block_b=2048,
                        matmul_dtype=jnp.bfloat16, out_dtype=jnp.bfloat16):
    """x: (B, D_in); w1: (D_in, 64); b1: (1, 64); w2: (64, D_out); b2: (1, D_out)."""
    B, D_in = x.shape
    D_out = w2.shape[-1]
    out_itemsize = jnp.dtype(out_dtype).itemsize

    TB = _choose_block_b(B, D_in, D_out, out_itemsize, block_b)
    # Ragged batches: partial last block — rows are independent and OOB writes
    # are dropped, so no wrapper-side padding pass and no post-slice needed.
    grid = (_cdiv(B, TB),)

    # Weights/biases are tiny; cast once in the wrapper, VMEM-resident in-kernel.
    w1m = w1.astype(matmul_dtype)
    w2m = w2.astype(matmul_dtype)
    b1f = b1.reshape(1, HIDDEN).astype(jnp.float32)
    b2f = b2.reshape(1, D_out).astype(jnp.float32)

    return pl.pallas_call(
        _meta_policy_kernel,
        out_shape=jax.ShapeDtypeStruct((B, D_out), out_dtype),
        grid_spec=pltpu.PrefetchScalarGridSpec(
            num_scalar_prefetch=0,
            grid=grid,
            in_specs=[
                pl.BlockSpec((TB, D_in), lambda i: (i, 0)),        # x: streamed f32
                pl.BlockSpec((D_in, HIDDEN), lambda i: (0, 0)),    # w1: resident
                pl.BlockSpec((1, HIDDEN), lambda i: (0, 0)),       # b1: resident
                pl.BlockSpec((HIDDEN, D_out), lambda i: (0, 0)),   # w2: resident
                pl.BlockSpec((1, D_out), lambda i: (0, 0)),        # b2: resident
            ],
            # D_out == full array dim -> no lane padding, no write amplification.
            out_specs=pl.BlockSpec((TB, D_out), lambda i: (i, 0)),
        ),
        compiler_params=pltpu.CompilerParams(
            dimension_semantics=("parallel",),   # shard batch grid over v7x's 2 TCs
            vmem_limit_bytes=_vmem_limit_bytes(TB, D_in, D_out, out_itemsize),
        ),
    )(x, w1m, b1f, w2m, b2f)


def init_params(key, input_dim, output_dim):
    """Deterministic init mirroring nn.Linear shapes (weights stored transposed)."""
    k1, k2, k3, k4 = jax.random.split(key, 4)
    lim1 = 1.0 / jnp.sqrt(input_dim)
    lim2 = 1.0 / jnp.sqrt(HIDDEN)
    w1 = jax.random.uniform(k1, (input_dim, HIDDEN), jnp.float32, -lim1, lim1)
    b1 = jax.random.uniform(k2, (1, HIDDEN), jnp.float32, -lim1, lim1)
    w2 = jax.random.uniform(k3, (HIDDEN, output_dim), jnp.float32, -lim2, lim2)
    b2 = jax.random.uniform(k4, (1, output_dim), jnp.float32, -lim2, lim2)
    return w1, b1, w2, b2


if __name__ == "__main__":
    key = jax.random.PRNGKey(0)
    kx, kp = jax.random.split(key)

    batch, input_dim, output_dim = 8, 32, 4
    x = jax.random.normal(kx, (batch, input_dim), jnp.float32)
    w1, b1, w2, b2 = init_params(kp, input_dim, output_dim)

    out = meta_policy_forward(x, w1, b1, w2, b2)
    jax.block_until_ready(out)

    # Pure-JAX f32 reference. Kernel uses bf16 matmul inputs (f32 accumulate)
    # and a bf16 output (sigmoid range [0, 1]), so allow bf16-class tolerance.
    h_ref = jnp.maximum(x @ w1 + b1, 0.0)
    y_ref = jax.nn.sigmoid(h_ref @ w2 + b2)
    assert out.shape == (batch, output_dim)
    out_f32 = out.astype(jnp.float32)
    assert jnp.allclose(out_f32, y_ref, atol=2e-2, rtol=0.0), (
        float(jnp.max(jnp.abs(out_f32 - y_ref))))

    print("KERNEL_OK")
</pallas_src>

<mosaic_0001>
module attributes {stable_mosaic.version = 11 : i64} {
  func.func @_meta_policy_kernel(%arg0: i32, %arg1: memref<8x32xf32, #tpu.memory_space<vmem>>, %arg2: memref<32x64xbf16, #tpu.memory_space<vmem>>, %arg3: memref<1x64xf32, #tpu.memory_space<vmem>>, %arg4: memref<64x4xbf16, #tpu.memory_space<vmem>>, %arg5: memref<1x4xf32, #tpu.memory_space<vmem>>, %arg6: memref<8x4xbf16, #tpu.memory_space<vmem>>) attributes {dimension_semantics = [#tpu.dimension_semantics<parallel>], iteration_bounds = array<i64: 1>, scalar_prefetch = 0 : i64, scratch_operands = 0 : i64, tpu.core_type = #tpu.core_type<tc>, window_params = [{transform_indices = @transform_0, window_bounds = array<i64: 8, 32>}, {pipeline_mode = #tpu.pipeline_mode<synchronous>, transform_indices = @transform_1, window_bounds = array<i64: 32, 64>}, {pipeline_mode = #tpu.pipeline_mode<synchronous>, transform_indices = @transform_2, window_bounds = array<i64: 1, 64>}, {pipeline_mode = #tpu.pipeline_mode<synchronous>, transform_indices = @transform_3, window_bounds = array<i64: 64, 4>}, {pipeline_mode = #tpu.pipeline_mode<synchronous>, transform_indices = @transform_4, window_bounds = array<i64: 1, 4>}, {transform_indices = @transform_5, window_bounds = array<i64: 8, 4>}]} {
    %c0 = arith.constant 0 : index
    %c0_0 = arith.constant 0 : index
    %0 = vector.load %arg1[%c0, %c0_0] : memref<8x32xf32, #tpu.memory_space<vmem>>, vector<8x32xf32>
    %1 = arith.truncf %0 : vector<8x32xf32> to vector<8x32xbf16>
    %c0_1 = arith.constant 0 : index
    %c0_2 = arith.constant 0 : index
    %2 = vector.load %arg2[%c0_1, %c0_2] : memref<32x64xbf16, #tpu.memory_space<vmem>>, vector<32x64xbf16>
    %cst = arith.constant dense<0.000000e+00> : vector<8x64xf32>
    %3 = tpu.matmul %1, %2, %cst {dimension_numbers = #tpu.dot_dimension_numbers<[1], [0], [0], [1], [0, 0, 1, 1], [], []>} : vector<8x32xbf16>, vector<32x64xbf16>, vector<8x64xf32> -> vector<8x64xf32>
    %c0_3 = arith.constant 0 : index
    %c0_4 = arith.constant 0 : index
    %4 = vector.load %arg3[%c0_3, %c0_4] : memref<1x64xf32, #tpu.memory_space<vmem>>, vector<1x64xf32>
    %5 = vector.broadcast %4 : vector<1x64xf32> to vector<8x64xf32>
    %6 = arith.addf %3, %5 : vector<8x64xf32>
    %cst_5 = arith.constant 0.000000e+00 : f32
    %7 = vector.broadcast %cst_5 : f32 to vector<8x64xf32>
    %8 = arith.maximumf %6, %7 : vector<8x64xf32>
    %9 = arith.truncf %8 : vector<8x64xf32> to vector<8x64xbf16>
    %c0_6 = arith.constant 0 : index
    %c0_7 = arith.constant 0 : index
    %10 = vector.load %arg4[%c0_6, %c0_7] : memref<64x4xbf16, #tpu.memory_space<vmem>>, vector<64x4xbf16>
    %cst_8 = arith.constant dense<0.000000e+00> : vector<8x4xf32>
    %11 = tpu.matmul %9, %10, %cst_8 {dimension_numbers = #tpu.dot_dimension_numbers<[1], [0], [0], [1], [0, 0, 1, 1], [], []>} : vector<8x64xbf16>, vector<64x4xbf16>, vector<8x4xf32> -> vector<8x4xf32>
    %c0_9 = arith.constant 0 : index
    %c0_10 = arith.constant 0 : index
    %12 = vector.load %arg5[%c0_9, %c0_10] : memref<1x4xf32, #tpu.memory_space<vmem>>, vector<1x4xf32>
    %13 = vector.broadcast %12 : vector<1x4xf32> to vector<8x4xf32>
    %14 = arith.addf %11, %13 : vector<8x4xf32>
    %15 = arith.negf %14 : vector<8x4xf32>
    %16 = math.exp %15 : vector<8x4xf32>
    %cst_11 = arith.constant 1.000000e+00 : f32
    %17 = vector.broadcast %cst_11 : f32 to vector<8x4xf32>
    %18 = arith.addf %17, %16 : vector<8x4xf32>
    %19 = arith.divf %17, %18 : vector<8x4xf32>
    %20 = arith.truncf %19 : vector<8x4xf32> to vector<8x4xbf16>
    %c0_12 = arith.constant 0 : index
    %c0_13 = arith.constant 0 : index
    %21 = vector.load %arg6[%c0_12, %c0_13] : memref<8x4xbf16, #tpu.memory_space<vmem>>, vector<8x4xbf16>
    tpu.vector_store %arg6[%c0_12, %c0_13], %20 {strides = array<i32>} : memref<8x4xbf16, #tpu.memory_space<vmem>>, vector<8x4xbf16>,
    return
  }
  func.func @transform_0(%arg0: i32) -> (i32, i32) {
    %c0_i32 = arith.constant 0 : i32
    %c0_i32_0 = arith.constant 0 : i32
    return %arg0, %c0_i32 : i32, i32
  }
  func.func @transform_1(%arg0: i32) -> (i32, i32) {
    %c0_i32 = arith.constant 0 : i32
    %c0_i32_0 = arith.constant 0 : i32
    %c0_i32_1 = arith.constant 0 : i32
    return %c0_i32, %c0_i32_0 : i32, i32
  }
  func.func @transform_2(%arg0: i32) -> (i32, i32) {
    %c0_i32 = arith.constant 0 : i32
    %c0_i32_0 = arith.constant 0 : i32
    %c0_i32_1 = arith.constant 0 : i32
    return %c0_i32, %c0_i32_0 : i32, i32
  }
  func.func @transform_3(%arg0: i32) -> (i32, i32) {
    %c0_i32 = arith.constant 0 : i32
    %c0_i32_0 = arith.constant 0 : i32
    %c0_i32_1 = arith.constant 0 : i32
    return %c0_i32, %c0_i32_0 : i32, i32
  }
  func.func @transform_4(%arg0: i32) -> (i32, i32) {
    %c0_i32 = arith.constant 0 : i32
    %c0_i32_0 = arith.constant 0 : i32
    %c0_i32_1 = arith.constant 0 : i32
    return %c0_i32, %c0_i32_0 : i32, i32
  }
  func.func @transform_5(%arg0: i32) -> (i32, i32) {
    %c0_i32 = arith.constant 0 : i32
    %c0_i32_0 = arith.constant 0 : i32
    return %arg0, %c0_i32 : i32, i32
  }
}

</mosaic_0001>

<llo_original>
// kernel: tpu_custom_call.1
$region0: #{tpu_custom_call.1}
  #allocation0 [shape = 'u32[]', space=smem, size = 0x4, offset = 0x4, fixed_abs, tag = 'smem constant byte address 0x4 - core index']
  #allocation1 [shape = 'u32[144,128]{1,0:T(1,128)}', space=vmem, size = 0x12000, scoped, tag = 'internal scratch']
  %s0 = inlined_call_operand.vmem [shape: f32[8,32], index: 0, kind: input, shape index: {}]
  %s1 = inlined_call_operand.vmem [shape: bf16[32,64], index: 1, kind: input, shape index: {}]
  %s2 = inlined_call_operand.vmem [shape: f32[1,64], index: 2, kind: input, shape index: {}]
  %s3 = inlined_call_operand.vmem [shape: bf16[64,4], index: 3, kind: input, shape index: {}]
  %s4 = inlined_call_operand.vmem [shape: f32[1,4], index: 4, kind: input, shape index: {}]
  %s5 = inlined_call_operand.vmem [shape: bf16[8,4], index: 5, kind: output, shape index: {}]
  %s6 = sld [smem:[#allocation0]]
  $region30: #{tpu_custom_call.1} parent=0
    _
  %s8 = ssub.s32 1, %s6
  %s9 = scalar_select 0, %s8, %s6
  // Predicated region
  $region2: #{tpu_custom_call.1} parent=0 // pred_check
    _
  $region3: #{tpu_custom_call.1} parent=0 // pred_check_branch
    %11 = sbr.rel (0) target = $region5
  $region4: #{tpu_custom_call.1} parent=0 // pred_region
    _
  $region5: #{tpu_custom_call.1} parent=0 // pred_fallthru
    _
  // Predicated region
  $region6: #{tpu_custom_call.1} parent=0 // pred_check
    _
  $region7: #{tpu_custom_call.1} parent=0 // pred_check_branch
    %13 = sbr.rel (0) target = $region9
  $region8: #{tpu_custom_call.1} parent=0 // pred_region
    _
  $region9: #{tpu_custom_call.1} parent=0 // pred_fallthru
    _
  // Predicated region
  $region10: #{tpu_custom_call.1} parent=0 // pred_check
    _
  $region11: #{tpu_custom_call.1} parent=0 // pred_check_branch
    %15 = sbr.rel (0) target = $region13
  $region12: #{tpu_custom_call.1} parent=0 // pred_region
    _
  $region13: #{tpu_custom_call.1} parent=0 // pred_fallthru
    _
  // Predicated region
  $region14: #{tpu_custom_call.1} parent=0 // pred_check
    _
  $region15: #{tpu_custom_call.1} parent=0 // pred_check_branch
    %17 = sbr.rel (0) target = $region17
  $region16: #{tpu_custom_call.1} parent=0 // pred_region
    _
  $region17: #{tpu_custom_call.1} parent=0 // pred_fallthru
    _
  // Predicated region
  $region18: #{tpu_custom_call.1} parent=0 // pred_check
    _
  $region19: #{tpu_custom_call.1} parent=0 // pred_check_branch
    %19 = sbr.rel (0) target = $region21
  $region20: #{tpu_custom_call.1} parent=0 // pred_region
    _
  $region21: #{tpu_custom_call.1} parent=0 // pred_fallthru
    _
  %v21 = vld [vmem:[%s0] sm:$0xff]
  %v22 = vpack.c.bf16 %v21, %v21
  %v23 = vld [vmem:[%s1] sm:$0xf]
  %v24 = vld [vmem:[%s1 + $0x4] sm:$0xf]
  %v25 = vld [vmem:[%s1 + $0x8] sm:$0xf]
  %v26 = vld [vmem:[%s1 + $0xc] sm:$0xf]
  %v27 = vld [vmem:[%s2] sm:$0x1]
  %v29 = vlaneseq
  %v30 = vshrl.u32 %v29, 7
  %v31 = vsub.s32 0, %v30
  %v32 = vrot.slane %v27, %v31
  %v38 = vunpack.c.l.b16 %v23
  %v39 = vunpack.c.l.b16 %v24
  %v40 = vunpack.c.l.b16 %v25
  %v41 = vunpack.c.l.b16 %v26
  %v42 = vpack.c.b16 %v39, %v38
  %v43 = vpack.c.b16 %v41, %v40
  %vm46 = vcmask 261120
  %v48 = vsel %vm46, %v22, 0
  %50 = vmatprep.subr.bf16.mxu0 0
  %51 = vmatpush1.bf16.msra.mxu0 %v42
  %52 = vmatprep.subr.bf16.mxu0 0
  %53 = vmatpush1.bf16.msra.mxu0 %v43
  %54 = vmatprep.subr.bf16.mxu0 0
  %55 = vmatpush1.bf16.msra.mxu0 0
  %56 = vmatprep.subr.bf16.mxu0 0
  %57 = vmatpush1.bf16.msra.mxu0 0
  %58 = vmatprep.subr.bf16.mxu0 0
  %59 = vmatpush1.bf16.msra.mxu0 0
  %60 = vmatprep.subr.bf16.mxu0 0
  %61 = vmatpush1.bf16.msra.mxu0 0
  %62 = vmatprep.subr.bf16.mxu0 0
  %63 = vmatpush1.bf16.msra.mxu0 0
  %64 = vmatprep.subr.bf16.mxu0 0
  %65 = vmatpush1.bf16.msra.mxu0 0
  %66 = vmatprep.subr.bf16.mxu0 0
  %67 = vmatpush1.bf16.msra.mxu0 0
  %68 = vmatprep.subr.bf16.mxu0 0
  %69 = vmatpush1.bf16.msra.mxu0 0
  %70 = vmatprep.subr.bf16.mxu0 0
  %71 = vmatpush1.bf16.msra.mxu0 0
  %72 = vmatprep.subr.bf16.mxu0 0
  %73 = vmatpush1.bf16.msra.mxu0 0
  %74 = vmatprep.subr.bf16.mxu0 0
  %75 = vmatpush1.bf16.msra.mxu0 0
  %76 = vmatprep.subr.bf16.mxu0 0
  %77 = vmatpush1.bf16.msra.mxu0 0
  %78 = vmatprep.subr.bf16.mxu0 0
  %79 = vmatpush1.bf16.msra.mxu0 0
  %80 = vmatprep.subr.bf16.mxu0 0
  %81 = vmatpush1.bf16.msra.mxu0 0
  %82 = vmatprep.mubr.bf16.mxu0 0
  %83 = vmatmul.mubr.bf16.gmra.mrb[0].mxu0 %v48
  %v84 = vpop.f32.mrb[0].mxu0
  %v85 = vadd.f32 %v32, %v84
  %v86 = vpop.f32.mrb[0].mxu0
  %v87 = vpop.f32.mrb[0].mxu0
  %v88 = vpop.f32.mrb[0].mxu0
  %89 = vdwg.mxu0
  %v90 = vmax.f32 %v85, 0.0
  %v91 = vpack.c.bf16 %v90, %v90
  %v92 = vld [vmem:[%s3] sm:$0xf]
  %v93 = vld [vmem:[%s3 + $0x4] sm:$0xf]
  %v94 = vld [vmem:[%s3 + $0x8] sm:$0xf]
  %v95 = vld [vmem:[%s3 + $0xc] sm:$0xf]
  %v96 = vld [vmem:[%s3 + $0x10] sm:$0xf]
  %v97 = vld [vmem:[%s3 + $0x14] sm:$0xf]
  %v98 = vld [vmem:[%s3 + $0x18] sm:$0xf]
  %v99 = vld [vmem:[%s3 + $0x1c] sm:$0xf]
  %v100 = vld [vmem:[%s4] sm:$0x1]
  %v102 = vlaneseq
  %v103 = vshrl.u32 %v102, 7
  %v104 = vsub.s32 0, %v103
  %v105 = vrot.slane %v100, %v104
  %v115 = vunpack.c.l.b16 %v92
  %v116 = vunpack.c.l.b16 %v93
  %v117 = vunpack.c.l.b16 %v94
  %v118 = vunpack.c.l.b16 %v95
  %v119 = vunpack.c.l.b16 %v96
  %v120 = vunpack.c.l.b16 %v97
  %v121 = vunpack.c.l.b16 %v98
  %v122 = vunpack.c.l.b16 %v99
  %v123 = vpack.c.b16 %v116, %v115
  %v124 = vpack.c.b16 %v118, %v117
  %v125 = vpack.c.b16 %v120, %v119
  %v126 = vpack.c.b16 %v122, %v121
  %vm131 = vcmask 523264
  %v133 = vsel %vm131, %v91, 0
  %135 = vmatprep.subr.bf16.mxu0 0
  %136 = vmatpush1.bf16.msra.mxu0 %v123
  %137 = vmatprep.subr.bf16.mxu0 0
  %138 = vmatpush1.bf16.msra.mxu0 %v124
  %139 = vmatprep.subr.bf16.mxu0 0
  %140 = vmatpush1.bf16.msra.mxu0 %v125
  %141 = vmatprep.subr.bf16.mxu0 0
  %142 = vmatpush1.bf16.msra.mxu0 %v126
  %143 = vmatprep.subr.bf16.mxu0 0
  %144 = vmatpush1.bf16.msra.mxu0 0
  %145 = vmatprep.subr.bf16.mxu0 0
  %146 = vmatpush1.bf16.msra.mxu0 0
  %147 = vmatprep.subr.bf16.mxu0 0
  %148 = vmatpush1.bf16.msra.mxu0 0
  %149 = vmatprep.subr.bf16.mxu0 0
  %150 = vmatpush1.bf16.msra.mxu0 0
  %151 = vmatprep.subr.bf16.mxu0 0
  %152 = vmatpush1.bf16.msra.mxu0 0
  %153 = vmatprep.subr.bf16.mxu0 0
  %154 = vmatpush1.bf16.msra.mxu0 0
  %155 = vmatprep.subr.bf16.mxu0 0
  %156 = vmatpush1.bf16.msra.mxu0 0
  %157 = vmatprep.subr.bf16.mxu0 0
  %158 = vmatpush1.bf16.msra.mxu0 0
  %159 = vmatprep.subr.bf16.mxu0 0
  %160 = vmatpush1.bf16.msra.mxu0 0
  %161 = vmatprep.subr.bf16.mxu0 0
  %162 = vmatpush1.bf16.msra.mxu0 0
  %163 = vmatprep.subr.bf16.mxu0 0
  %164 = vmatpush1.bf16.msra.mxu0 0
  %165 = vmatprep.subr.bf16.mxu0 0
  %166 = vmatpush1.bf16.msra.mxu0 0
  %167 = vmatprep.mubr.bf16.mxu0 0
  %168 = vmatmul.mubr.bf16.gmra.mrb[0].mxu0 %v133
  %v169 = vpop.f32.mrb[0].mxu0
  %v170 = vadd.f32 %v105, %v169
  %v171 = vpop.f32.mrb[0].mxu0
  %v172 = vpop.f32.mrb[0].mxu0
  %v173 = vpop.f32.mrb[0].mxu0
  %174 = vdwg.mxu0
  %v175 = vxor.u32 %v170, 2147483648
  %v176 = vmul.f32 %v175, 1.442695
  %v177 = vpow.pop %v176
  %v178 = vadd.f32 %v177, 1.0
  %v179 = vrcp.pop %v178
  %v180 = vmul.f32 1.0, %v179
  %v181 = vpack.c.bf16 %v180, %v180
  %vm182 = vcmask 27648
  %183 = vst.msk [vmem:[%s5] sm:$0xf] %vm182, %v181
  // Predicated region
  $region22: #{tpu_custom_call.1} parent=0 // pred_check
    _
  $region23: #{tpu_custom_call.1} parent=0 // pred_check_branch
    %185 = sbr.rel (0) target = $region25
  $region24: #{tpu_custom_call.1} parent=0 // pred_region
    _
  $region25: #{tpu_custom_call.1} parent=0 // pred_fallthru
    _
  // Predicated region
  $region26: #{tpu_custom_call.1} parent=0 // pred_check
    _
  $region27: #{tpu_custom_call.1} parent=0 // pred_check_branch
    %187 = sbr.rel (0) target = $region29
  $region28: #{tpu_custom_call.1} parent=0 // pred_region
    _
  $region29: #{tpu_custom_call.1} parent=0 // pred_fallthru
    _

</llo_original>
